<compile_context>
chip_gen: v5e
topology: v5e:2x2
jax: 0.10.0
libtpu: 0.0.40
codegen_flags: <defaults>
</compile_context>

<pallas_src>
import jax
import jax.numpy as jnp
from jax.experimental import pallas as pl
from jax.experimental.pallas import tpu as pltpu


def _round_up(n, m):
    return (n + m - 1) // m * m


def _mlp_kernel(xT_ref, w1_ref, b1_ref, w2_ref, b2_ref, w3_ref, b3_ref, o_ref):
    # Batch lives on the lane (minor) dim; every activation is lane-dense.
    xT = xT_ref[...]                                                     # (42, Bt)
    h1 = jnp.dot(w1_ref[...], xT, preferred_element_type=jnp.float32)   # (16, Bt)
    h1 = jnp.maximum(h1 + b1_ref[...], 0.0)                             # bias + ReLU (f32)
    h2 = jnp.dot(w2_ref[...], h1.astype(w2_ref.dtype),
                 preferred_element_type=jnp.float32)                    # (16, Bt)
    h2 = jnp.maximum(h2 + b2_ref[...], 0.0)
    # 16->1 layer as a real MXU matmul -> lane-dense (1, Bt) store.
    o_ref[...] = (jnp.dot(w3_ref[...], h2.astype(w3_ref.dtype),
                          preferred_element_type=jnp.float32) + b3_ref[...])


def net_forward(x, params, *, block_cols=16384, use_bf16_matmul=False, target_steps=4):
    """x: (B, ...) with prod(...) == 42 (flattened inside, like nn.Flatten)."""
    B = x.shape[0]
    x2d = x.reshape(B, -1).astype(jnp.float32)                          # Flatten
    assert x2d.shape[1] == 42, "flattened feature dim must be 42"
    w1, b1, w2, b2, w3, b3 = params

    # Feature-major operand layout (defensive reshapes for ported state_dicts).
    w1T = jnp.asarray(w1, jnp.float32).T                                # (16, 42)
    w2T = jnp.asarray(w2, jnp.float32).T                                # (16, 16)
    w3T = jnp.asarray(w3, jnp.float32).reshape(1, 16)                   # (1, 16)
    b1c = jnp.asarray(b1, jnp.float32).reshape(-1, 1)                   # (16, 1)
    b2c = jnp.asarray(b2, jnp.float32).reshape(-1, 1)                   # (16, 1)
    b3c = jnp.asarray(b3, jnp.float32).reshape(1, 1)                    # (1, 1)

    # Lane tile over the batch: multiple of 128 (lanes), capped by block_cols,
    # and split into >= target_steps grid steps when the batch is big enough so
    # v7x's two TensorCores both get work (grid=(1,) leaves one TC idle).
    steps = max(1, pl.cdiv(B, block_cols))
    if B >= target_steps * 128:
        steps = max(steps, target_steps)
    Bt = _round_up(pl.cdiv(B, steps), 128)
    Bp = _round_up(B, Bt)

    xT = x2d.T                                                          # (42, B); one extra HBM pass
    if Bp != B:
        xT = jnp.pad(xT, ((0, 0), (0, Bp - B)))

    # Optional bf16 MXU operands (f32 accumulation kept via preferred_element_type).
    # NOTE: the f32 path uses the TPU default matmul precision; for strict
    # bit-closeness to a CPU f32 model, set jax.default_matmul_precision("highest").
    mxu_dtype = jnp.bfloat16 if use_bf16_matmul else jnp.float32
    xT = xT.astype(mxu_dtype)
    w1T = w1T.astype(mxu_dtype)
    w2T = w2T.astype(mxu_dtype)
    w3T = w3T.astype(mxu_dtype)

    const = lambda i: (0, 0)
    in_specs = [
        pl.BlockSpec((42, Bt), lambda i: (0, i)),   # xT tile (pipelined over lanes)
        pl.BlockSpec((16, 42), const),              # W1^T — VMEM resident
        pl.BlockSpec((16, 1), const),               # b1
        pl.BlockSpec((16, 16), const),              # W2^T
        pl.BlockSpec((16, 1), const),               # b2
        pl.BlockSpec((1, 16), const),               # W3^T
        pl.BlockSpec((1, 1), const),                # b3
    ]
    out_specs = pl.BlockSpec((1, Bt), lambda i: (0, i))   # lane-dense output

    el = 2 if use_bf16_matmul else 4
    weight_bytes = el * (42 * 16 + 16 * 16 + 16) + 4 * (16 + 16 + 1)
    cost = pl.CostEstimate(
        flops=2 * Bp * (42 * 16 + 16 * 16 + 16),
        transcendentals=0,
        bytes_accessed=Bp * 42 * el + Bp * 4 + weight_bytes,
    )

    out = pl.pallas_call(
        _mlp_kernel,
        out_shape=jax.ShapeDtypeStruct((1, Bp), jnp.float32),
        grid=(Bp // Bt,),
        in_specs=in_specs,
        out_specs=out_specs,
        compiler_params=pltpu.CompilerParams(
            dimension_semantics=("parallel",),       # engages both TCs on v7x
        ),
        cost_estimate=cost,
    )(xT, w1T, b1c, w2T, b2c, w3T, b3c)
    return out[0, :B].reshape(B, 1)


def init_params(key):
    """Deterministic init mimicking nn.Linear's U(-1/sqrt(fan_in), 1/sqrt(fan_in))."""
    ks = jax.random.split(key, 6)

    def linear(kw, kb, fan_in, fan_out):
        bound = 1.0 / jnp.sqrt(jnp.float32(fan_in))
        w = jax.random.uniform(kw, (fan_in, fan_out), jnp.float32, -bound, bound)
        b = jax.random.uniform(kb, (1, fan_out), jnp.float32, -bound, bound)
        return w, b

    w1, b1 = linear(ks[0], ks[1], 42, 16)
    w2, b2 = linear(ks[2], ks[3], 16, 16)
    w3, b3 = linear(ks[4], ks[5], 16, 1)
    return (w1, b1, w2, b2, w3, b3)


def _reference(x, params):
    w1, b1, w2, b2, w3, b3 = params
    h = x.reshape(x.shape[0], -1).astype(jnp.float32)
    h = jnp.maximum(h @ w1 + b1, 0.0)
    h = jnp.maximum(h @ w2 + b2, 0.0)
    return h @ w3 + b3


if __name__ == "__main__":
    key = jax.random.PRNGKey(0)
    k_param, k1, k2, k3 = jax.random.split(key, 4)
    params = init_params(k_param)

    # 1) Small batch, unflattened input (6, 7) -> 42 features.
    x_small = jax.random.normal(k1, (8, 6, 7), dtype=jnp.float32)
    out_small = net_forward(x_small, params)
    jax.block_until_ready(out_small)
    ref_small = _reference(x_small, params)
    assert out_small.shape == (8, 1)
    assert jnp.allclose(out_small, ref_small, atol=1e-4, rtol=1e-4)

    # 2) Ragged batch with a small tile, exercising padding + a multi-step grid.
    x_ragged = jax.random.normal(k2, (300, 42), dtype=jnp.float32)
    out_ragged = net_forward(x_ragged, params, block_cols=128)
    jax.block_until_ready(out_ragged)
    ref_ragged = _reference(x_ragged, params)
    assert out_ragged.shape == (300, 1)
    assert jnp.allclose(out_ragged, ref_ragged, atol=1e-4, rtol=1e-4)

    # 3) bf16 MXU-operand path (f32 accumulation), multi-step grid for megacore.
    x_bf16 = jax.random.normal(k3, (520, 42), dtype=jnp.float32)
    out_bf16 = net_forward(x_bf16, params, use_bf16_matmul=True)
    jax.block_until_ready(out_bf16)
    ref_bf16 = _reference(x_bf16, params)
    assert out_bf16.shape == (520, 1)
    assert jnp.allclose(out_bf16, ref_bf16, atol=5e-2, rtol=5e-2)

    print("KERNEL_OK")
</pallas_src>

<mosaic_0001>
module attributes {stable_mosaic.version = 11 : i64} {
  func.func @_mlp_kernel(%arg0: i32, %arg1: memref<42x128xf32, #tpu.memory_space<vmem>>, %arg2: memref<16x42xf32, #tpu.memory_space<vmem>>, %arg3: memref<16x1xf32, #tpu.memory_space<vmem>>, %arg4: memref<16x16xf32, #tpu.memory_space<vmem>>, %arg5: memref<16x1xf32, #tpu.memory_space<vmem>>, %arg6: memref<1x16xf32, #tpu.memory_space<vmem>>, %arg7: memref<1x1xf32, #tpu.memory_space<vmem>>, %arg8: memref<1x128xf32, #tpu.memory_space<vmem>>) attributes {dimension_semantics = [#tpu.dimension_semantics<parallel>], iteration_bounds = array<i64: 1>, scalar_prefetch = 0 : i64, scratch_operands = 0 : i64, tpu.core_type = #tpu.core_type<tc>, window_params = [{transform_indices = @transform_0, window_bounds = array<i64: 42, 128>}, {pipeline_mode = #tpu.pipeline_mode<synchronous>, transform_indices = @transform_1, window_bounds = array<i64: 16, 42>}, {pipeline_mode = #tpu.pipeline_mode<synchronous>, transform_indices = @transform_2, window_bounds = array<i64: 16, 1>}, {pipeline_mode = #tpu.pipeline_mode<synchronous>, transform_indices = @transform_3, window_bounds = array<i64: 16, 16>}, {pipeline_mode = #tpu.pipeline_mode<synchronous>, transform_indices = @transform_4, window_bounds = array<i64: 16, 1>}, {pipeline_mode = #tpu.pipeline_mode<synchronous>, transform_indices = @transform_5, window_bounds = array<i64: 1, 16>}, {pipeline_mode = #tpu.pipeline_mode<synchronous>, transform_indices = @transform_6, window_bounds = array<i64: 1, 1>}, {transform_indices = @transform_7, window_bounds = array<i64: 1, 128>}]} {
    %c0 = arith.constant 0 : index
    %c0_0 = arith.constant 0 : index
    %0 = vector.load %arg1[%c0, %c0_0] : memref<42x128xf32, #tpu.memory_space<vmem>>, vector<42x128xf32>
    %c0_1 = arith.constant 0 : index
    %c0_2 = arith.constant 0 : index
    %1 = vector.load %arg2[%c0_1, %c0_2] : memref<16x42xf32, #tpu.memory_space<vmem>>, vector<16x42xf32>
    %cst = arith.constant dense<0.000000e+00> : vector<16x128xf32>
    %2 = tpu.matmul %1, %0, %cst {dimension_numbers = #tpu.dot_dimension_numbers<[1], [0], [0], [1], [0, 0, 1, 1], [], []>} : vector<16x42xf32>, vector<42x128xf32>, vector<16x128xf32> -> vector<16x128xf32>
    %c0_3 = arith.constant 0 : index
    %c0_4 = arith.constant 0 : index
    %3 = vector.load %arg3[%c0_3, %c0_4] : memref<16x1xf32, #tpu.memory_space<vmem>>, vector<16x1xf32>
    %4 = vector.broadcast %3 : vector<16x1xf32> to vector<16x128xf32>
    %5 = arith.addf %2, %4 : vector<16x128xf32>
    %cst_5 = arith.constant 0.000000e+00 : f32
    %6 = vector.broadcast %cst_5 : f32 to vector<16x128xf32>
    %7 = arith.maximumf %5, %6 : vector<16x128xf32>
    %c0_6 = arith.constant 0 : index
    %c0_7 = arith.constant 0 : index
    %8 = vector.load %arg4[%c0_6, %c0_7] : memref<16x16xf32, #tpu.memory_space<vmem>>, vector<16x16xf32>
    %cst_8 = arith.constant dense<0.000000e+00> : vector<16x128xf32>
    %9 = tpu.matmul %8, %7, %cst_8 {dimension_numbers = #tpu.dot_dimension_numbers<[1], [0], [0], [1], [0, 0, 1, 1], [], []>} : vector<16x16xf32>, vector<16x128xf32>, vector<16x128xf32> -> vector<16x128xf32>
    %c0_9 = arith.constant 0 : index
    %c0_10 = arith.constant 0 : index
    %10 = vector.load %arg5[%c0_9, %c0_10] : memref<16x1xf32, #tpu.memory_space<vmem>>, vector<16x1xf32>
    %11 = vector.broadcast %10 : vector<16x1xf32> to vector<16x128xf32>
    %12 = arith.addf %9, %11 : vector<16x128xf32>
    %cst_11 = arith.constant 0.000000e+00 : f32
    %13 = vector.broadcast %cst_11 : f32 to vector<16x128xf32>
    %14 = arith.maximumf %12, %13 : vector<16x128xf32>
    %c0_12 = arith.constant 0 : index
    %c0_13 = arith.constant 0 : index
    %15 = vector.load %arg6[%c0_12, %c0_13] : memref<1x16xf32, #tpu.memory_space<vmem>>, vector<1x16xf32>
    %cst_14 = arith.constant dense<0.000000e+00> : vector<1x128xf32>
    %16 = tpu.matmul %15, %14, %cst_14 {dimension_numbers = #tpu.dot_dimension_numbers<[1], [0], [0], [1], [0, 0, 1, 1], [], []>} : vector<1x16xf32>, vector<16x128xf32>, vector<1x128xf32> -> vector<1x128xf32>
    %c0_15 = arith.constant 0 : index
    %c0_16 = arith.constant 0 : index
    %17 = vector.load %arg7[%c0_15, %c0_16] : memref<1x1xf32, #tpu.memory_space<vmem>>, vector<1x1xf32>
    %18 = vector.broadcast %17 : vector<1x1xf32> to vector<1x128xf32>
    %19 = arith.addf %16, %18 : vector<1x128xf32>
    %c0_17 = arith.constant 0 : index
    %c0_18 = arith.constant 0 : index
    %20 = vector.load %arg8[%c0_17, %c0_18] : memref<1x128xf32, #tpu.memory_space<vmem>>, vector<1x128xf32>
    tpu.vector_store %arg8[%c0_17, %c0_18], %19 {strides = array<i32>} : memref<1x128xf32, #tpu.memory_space<vmem>>, vector<1x128xf32>,
    return
  }
  func.func @transform_0(%arg0: i32) -> (i32, i32) {
    %c0_i32 = arith.constant 0 : i32
    %c0_i32_0 = arith.constant 0 : i32
    return %c0_i32, %arg0 : i32, i32
  }
  func.func @transform_1(%arg0: i32) -> (i32, i32) {
    %c0_i32 = arith.constant 0 : i32
    %c0_i32_0 = arith.constant 0 : i32
    %c0_i32_1 = arith.constant 0 : i32
    return %c0_i32, %c0_i32_0 : i32, i32
  }
  func.func @transform_2(%arg0: i32) -> (i32, i32) {
    %c0_i32 = arith.constant 0 : i32
    %c0_i32_0 = arith.constant 0 : i32
    %c0_i32_1 = arith.constant 0 : i32
    return %c0_i32, %c0_i32_0 : i32, i32
  }
  func.func @transform_3(%arg0: i32) -> (i32, i32) {
    %c0_i32 = arith.constant 0 : i32
    %c0_i32_0 = arith.constant 0 : i32
    %c0_i32_1 = arith.constant 0 : i32
    return %c0_i32, %c0_i32_0 : i32, i32
  }
  func.func @transform_4(%arg0: i32) -> (i32, i32) {
    %c0_i32 = arith.constant 0 : i32
    %c0_i32_0 = arith.constant 0 : i32
    %c0_i32_1 = arith.constant 0 : i32
    return %c0_i32, %c0_i32_0 : i32, i32
  }
  func.func @transform_5(%arg0: i32) -> (i32, i32) {
    %c0_i32 = arith.constant 0 : i32
    %c0_i32_0 = arith.constant 0 : i32
    %c0_i32_1 = arith.constant 0 : i32
    return %c0_i32, %c0_i32_0 : i32, i32
  }
  func.func @transform_6(%arg0: i32) -> (i32, i32) {
    %c0_i32 = arith.constant 0 : i32
    %c0_i32_0 = arith.constant 0 : i32
    %c0_i32_1 = arith.constant 0 : i32
    return %c0_i32, %c0_i32_0 : i32, i32
  }
  func.func @transform_7(%arg0: i32) -> (i32, i32) {
    %c0_i32 = arith.constant 0 : i32
    %c0_i32_0 = arith.constant 0 : i32
    return %c0_i32, %arg0 : i32, i32
  }
}

</mosaic_0001>

<llo_original>
// kernel: tpu_custom_call.1
$region0: #{tpu_custom_call.1}
  #allocation0 [shape = 'u32[]', space=smem, size = 0x4, offset = 0x4, fixed_abs, tag = 'smem constant byte address 0x4 - core index']
  #allocation1 [shape = 'u32[72,128]{1,0:T(1,128)}', space=vmem, size = 0x9000, scoped, tag = 'internal scratch']
  #allocation2 [shape = 'f32[1,1]{1,0:T(1,128)S(1)}', space=vmem, size = 0x200, scoped, tag = 'scoped memory for tpu_custom_call.1']
  %s0 = inlined_call_operand.hbm [shape: f32[42,128], index: 0, kind: input, shape index: {}]
  %s1 = inlined_call_operand.vmem [shape: f32[16,42], index: 1, kind: input, shape index: {}]
  %s2 = inlined_call_operand.vmem [shape: f32[16,1], index: 2, kind: input, shape index: {}]
  %s3 = inlined_call_operand.vmem [shape: f32[16,16], index: 3, kind: input, shape index: {}]
  %s4 = inlined_call_operand.vmem [shape: f32[16,1], index: 4, kind: input, shape index: {}]
  %s5 = inlined_call_operand.vmem [shape: f32[1,16], index: 5, kind: input, shape index: {}]
  %s6 = inlined_call_operand.<no memory space> [shape: f32[1,1], index: 6, kind: input, shape index: {}]
  %s7 = inlined_call_operand.hbm [shape: f32[1,128], index: 7, kind: output, shape index: {}]
  %s8 = sld [smem:[#allocation0]]
  $region42: #{tpu_custom_call.1} parent=0
    _
  %s10 = ssub.s32 1, %s8
  %s11 = scalar_select 0, %s10, %s8
  %v12 = vstv %s6
  %13 = vst [vmem:[#allocation2] sm:$0x1] %v12
  $region1: #{tpu_custom_call.1} parent=0
    #allocation3 [shape = 'u8[24576]{0}', space=vmem, size = 0x6000, scoped, tag = 'input window, operand 0, single buffered']
    #allocation4 [shape = 's32[1]{0}', space=sflag, size = 0x4, scoped, tag = 'scoped memory for tpu_custom_call.1']
    #allocation5 [shape = 's32[1]{0}', space=sflag, size = 0x4, scoped, tag = 'scoped memory for tpu_custom_call.1']
    #allocation6 [shape = 'u8[512]{0}', space=vmem, size = 0x400, scoped, tag = 'output window, operand 0, single buffered']
    %14 = vsyncpa [#allocation4], 0
    %15 = vsyncpa [#allocation5], 0
    // Predicated region
    $region2: #{tpu_custom_call.1} parent=1 // pred_check
      _
    $region3: #{tpu_custom_call.1} parent=1 // pred_check_branch
      %17 = sbr.rel (0) target = $region5
    $region4: #{tpu_custom_call.1} parent=1 // pred_region
      %19 = vsyncadd [#allocation4], 0
      %s20 = sshll.u32 %s0, 4
      %s21 = int_to_ptr.hbm [resolvable:$true] %s20
      %s22 = sshll.u32 [#allocation3], 4
      %s23 = int_to_ptr.vmem [resolvable:$true] %s22
      %28 = dma.hbm_to_vmem [thread:$0]  %s21, 768, %s23, [#allocation4], 128, 128, 8
    $region5: #{tpu_custom_call.1} parent=1 // pred_fallthru
      _
    // Predicated region
    $region6: #{tpu_custom_call.1} parent=1 // pred_check
      _
    $region7: #{tpu_custom_call.1} parent=1 // pred_check_branch
      %30 = sbr.rel (0) target = $region9
    $region8: #{tpu_custom_call.1} parent=1 // pred_region
      _
    $region9: #{tpu_custom_call.1} parent=1 // pred_fallthru
      _
    // Predicated region
    $region10: #{tpu_custom_call.1} parent=1 // pred_check
      _
    $region11: #{tpu_custom_call.1} parent=1 // pred_check_branch
      %32 = sbr.rel (0) target = $region13
    $region12: #{tpu_custom_call.1} parent=1 // pred_region
      _
    $region13: #{tpu_custom_call.1} parent=1 // pred_fallthru
      _
    // Predicated region
    $region14: #{tpu_custom_call.1} parent=1 // pred_check
      _
    $region15: #{tpu_custom_call.1} parent=1 // pred_check_branch
      %34 = sbr.rel (0) target = $region17
    $region16: #{tpu_custom_call.1} parent=1 // pred_region
      _
    $region17: #{tpu_custom_call.1} parent=1 // pred_fallthru
      _
    // Predicated region
    $region18: #{tpu_custom_call.1} parent=1 // pred_check
      _
    $region19: #{tpu_custom_call.1} parent=1 // pred_check_branch
      %36 = sbr.rel (0) target = $region21
    $region20: #{tpu_custom_call.1} parent=1 // pred_region
      _
    $region21: #{tpu_custom_call.1} parent=1 // pred_fallthru
      _
    // Predicated region
    $region22: #{tpu_custom_call.1} parent=1 // pred_check
      _
    $region23: #{tpu_custom_call.1} parent=1 // pred_check_branch
      %38 = sbr.rel (0) target = $region25
    $region24: #{tpu_custom_call.1} parent=1 // pred_region
      _
    $region25: #{tpu_custom_call.1} parent=1 // pred_fallthru
      _
    // Predicated region
    $region26: #{tpu_custom_call.1} parent=1 // pred_check
      _
    $region27: #{tpu_custom_call.1} parent=1 // pred_check_branch
      %40 = sbr.rel (0) target = $region29
    $region28: #{tpu_custom_call.1} parent=1 // pred_region
      _
    $region29: #{tpu_custom_call.1} parent=1 // pred_fallthru
      _
    // Predicated region
    $region30: #{tpu_custom_call.1} parent=1 // pred_check
      _
    $region31: #{tpu_custom_call.1} parent=1 // pred_check_branch
      %42 = sbr.rel (0) target = $region33
    $region32: #{tpu_custom_call.1} parent=1 // pred_region
      %44 = dma.done [#allocation4], 768
    $region33: #{tpu_custom_call.1} parent=1 // pred_fallthru
      _
    %v45 = vld [vmem:[#allocation3] sm:$0xff]
    %v46 = vld [vmem:[#allocation3 + $0x8] sm:$0xff]
    %v47 = vld [vmem:[#allocation3 + $0x10] sm:$0xff]
    %v48 = vld [vmem:[#allocation3 + $0x18] sm:$0xff]
    %v49 = vld [vmem:[#allocation3 + $0x20] sm:$0xff]
    %v50 = vld [vmem:[#allocation3 + $0x28] sm:$0x3]
    %v51 = vld [vmem:[%s1] sm:$0xff]
    %v52 = vld [vmem:[%s1 + $0x8] sm:$0xff]
    %v53 = vld [vmem:[%s2] sm:$0xff]
    %v54 = vld [vmem:[%s2 + $0x8] sm:$0xff]
    %56 = vset.pattern.permute.xlu0 0
    %57 = vperm.xlu0 %56, %v53
    %v58 = vpop.permute.xlu0 %57
    %61 = vset.pattern.permute.xlu0 0
    %62 = vperm.xlu0 %61, %v54
    %v63 = vpop.permute.xlu0 %62
    %vm65 = vcmask 343040
    %v67 = vsel %vm65, %v51, 0
    %v70 = vsel %vm65, %v52, 0
    %vm72 = vcmask 1041408
    %v74 = vsel %vm72, %v50, 0
    %76 = vmatpush.msra.mxu0 0.0
    %77 = vmatpush.msra.mxu0 0.0
    %78 = vmatpush.msra.mxu0 0.0
    %79 = vmatpush.msra.mxu0 0.0
    %80 = vmatpush.msra.mxu0 0.0
    %81 = vmatpush.msra.mxu0 0.0
    %82 = vmatpush.msra.mxu0 0.0
    %83 = vmatpush.msra.mxu0 0.0
    %84 = vmatpush.msra.mxu0 0.0
    %85 = vmatpush.msra.mxu0 0.0
    %86 = vmatpush.msra.mxu0 %v74
    %87 = vmatpush.msra.mxu0 %v49
    %88 = vmatpush.msra.mxu0 %v48
    %89 = vmatpush.msra.mxu0 %v47
    %90 = vmatpush.msra.mxu0 %v46
    %91 = vmatpush.msra.mxu0 %v45
    %92 = vmatmul.f32.gmra.mxu0 %v67
    %v93 = vpop.f32.mrf.mxu0
    %v94 = vadd.f32 %v58, %v93
    %95 = vmatmul.f32.gmra.mxu0 %v70
    %v96 = vpop.f32.mrf.mxu0
    %v97 = vadd.f32 %v63, %v96
    %98 = vdwg.mxu0
    %v99 = vmax.f32 %v94, 0.0
    %v100 = vmax.f32 %v97, 0.0
    %v101 = vld [vmem:[%s3] sm:$0xff]
    %v102 = vld [vmem:[%s3 + $0x8] sm:$0xff]
    %v103 = vld [vmem:[%s4] sm:$0xff]
    %v104 = vld [vmem:[%s4 + $0x8] sm:$0xff]
    %106 = vset.pattern.permute.xlu0 0
    %107 = vperm.xlu0 %106, %v103
    %v108 = vpop.permute.xlu0 %107
    %111 = vset.pattern.permute.xlu0 0
    %112 = vperm.xlu0 %111, %v104
    %v113 = vpop.permute.xlu0 %112
    %vm115 = vcmask 130048
    %v117 = vsel %vm115, %v101, 0
    %v120 = vsel %vm115, %v102, 0
    %122 = vmatpush.msra.mxu0 0.0
    %123 = vmatpush.msra.mxu0 0.0
    %124 = vmatpush.msra.mxu0 0.0
    %125 = vmatpush.msra.mxu0 0.0
    %126 = vmatpush.msra.mxu0 0.0
    %127 = vmatpush.msra.mxu0 0.0
    %128 = vmatpush.msra.mxu0 0.0
    %129 = vmatpush.msra.mxu0 0.0
    %130 = vmatpush.msra.mxu0 0.0
    %131 = vmatpush.msra.mxu0 0.0
    %132 = vmatpush.msra.mxu0 0.0
    %133 = vmatpush.msra.mxu0 0.0
    %134 = vmatpush.msra.mxu0 0.0
    %135 = vmatpush.msra.mxu0 0.0
    %136 = vmatpush.msra.mxu0 %v100
    %137 = vmatpush.msra.mxu0 %v99
    %138 = vmatmul.f32.gmra.mxu0 %v117
    %v139 = vpop.f32.mrf.mxu0
    %v140 = vadd.f32 %v108, %v139
    %141 = vmatmul.f32.gmra.mxu0 %v120
    %v142 = vpop.f32.mrf.mxu0
    %v143 = vadd.f32 %v113, %v142
    %144 = vdwg.mxu0
    %v145 = vmax.f32 %v140, 0.0
    %v146 = vmax.f32 %v143, 0.0
    %v147 = vld [vmem:[%s5] sm:$0x1]
    %v148 = vld [vmem:[#allocation2] sm:$0x1]
    %150 = vset.pattern.permute.xlu0 0
    %151 = vperm.xlu0 %150, %v148
    %v152 = vpop.permute.xlu0 %151
    %v154 = vperm.slane %v152, 0
    %v156 = vsel %vm115, %v147, 0
    %158 = vmatpush.msra.mxu0 0.0
    %159 = vmatpush.msra.mxu0 0.0
    %160 = vmatpush.msra.mxu0 0.0
    %161 = vmatpush.msra.mxu0 0.0
    %162 = vmatpush.msra.mxu0 0.0
    %163 = vmatpush.msra.mxu0 0.0
    %164 = vmatpush.msra.mxu0 0.0
    %165 = vmatpush.msra.mxu0 0.0
    %166 = vmatpush.msra.mxu0 0.0
    %167 = vmatpush.msra.mxu0 0.0
    %168 = vmatpush.msra.mxu0 0.0
    %169 = vmatpush.msra.mxu0 0.0
    %170 = vmatpush.msra.mxu0 0.0
    %171 = vmatpush.msra.mxu0 0.0
    %172 = vmatpush.msra.mxu0 %v146
    %173 = vmatpush.msra.mxu0 %v145
    %174 = vmatmul.f32.gmra.mxu0 %v156
    %v175 = vpop.f32.mrf.mxu0
    %v176 = vadd.f32 %v154, %v175
    %177 = vdwg.mxu0
    %178 = vst [vmem:[#allocation6] sm:$0x1] %v176
    // Predicated region
    $region34: #{tpu_custom_call.1} parent=1 // pred_check
      _
    $region35: #{tpu_custom_call.1} parent=1 // pred_check_branch
      %180 = sbr.rel (0) target = $region37
    $region36: #{tpu_custom_call.1} parent=1 // pred_region
      %182 = vsyncadd [#allocation5], 0
      %s184 = sshll.u32 [#allocation6], 4
      %s185 = int_to_ptr.vmem [resolvable:$true] %s184
      %s186 = sshll.u32 %s7, 4
      %s187 = int_to_ptr.hbm [resolvable:$true] %s186
      %189 = dma.vmem_to_hbm [thread:$0]  %s185, 16, %s187, [#allocation5]
    $region37: #{tpu_custom_call.1} parent=1 // pred_fallthru
      _
    // Predicated region
    $region38: #{tpu_custom_call.1} parent=1 // pred_check
      _
    $region39: #{tpu_custom_call.1} parent=1 // pred_check_branch
      %191 = sbr.rel (0) target = $region41
    $region40: #{tpu_custom_call.1} parent=1 // pred_region
      %193 = dma.done [#allocation5], 16
    $region41: #{tpu_custom_call.1} parent=1 // pred_fallthru
      _
    %194 = vsyncpa [#allocation4], 1
    %195 = vsyncpa [#allocation5], 1

</llo_original>
